<compile_context>
chip_gen: v6e
topology: v6e:2x2x1
jax: 0.10.0
libtpu: 0.0.40
codegen_flags: <defaults>
</compile_context>

<pallas_src>
import functools

import jax
import jax.numpy as jnp
from jax.experimental import pallas as pl
from jax.experimental.pallas import tpu as pltpu


def _round_up(x, m):
    return ((x + m - 1) // m) * m


def _tile_bytes(shape, itemsize):
    """Approximate VMEM footprint of a block (lane dim padded to 128, sublane to 8)."""
    if len(shape) == 1:
        return _round_up(int(shape[0]), 128) * itemsize
    lead = 1
    for d in shape[:-2]:
        lead *= int(d)
    return lead * _round_up(int(shape[-2]), 8) * _round_up(int(shape[-1]), 128) * itemsize


def _fused_kernel(x_ref, p_ref, o_ref, *, c, n_out, hpwp, inv_area):
    # x_ref: (b_tile*C, H*W)   p_ref: (H*W, Hp*Wp) 0/1   o_ref: (b_tile, n_out*Hp*Wp)
    b_tile = o_ref.shape[0]
    # Single MXU matmul in the input dtype; f32 accumulation.
    y = jnp.dot(x_ref[...], p_ref[...], preferred_element_type=jnp.float32)
    y = (y * inv_area).astype(o_ref.dtype).reshape(b_tile, c, hpwp)  # lane dim unchanged
    # Lane-dense 2-D output block: per-channel lane-offset stores; the HBM
    # writeback DMA of the (b_tile, n_out*Hp*Wp) block stays fully dense.
    for ch in range(c):
        o_ref[:, ch * hpwp:(ch + 1) * hpwp] = y[:, ch, :]
    if n_out > c:
        # Zero-expansion channels (x.mul(0)) as one slab store.
        o_ref[:, c * hpwp:] = jnp.zeros((b_tile, (n_out - c) * hpwp), o_ref.dtype)


def _separable_kernel(x_ref, pw_ref, o_ref, *, c, n_out, h, hp, s, wp, inv_area):
    # x_ref: (b_tile*C*H, W)   pw_ref: (W, Wp) 0/1   o_ref: (b_tile, n_out*Hp, Wp)
    b_tile = o_ref.shape[0]
    # W pooling: one MXU matmul with a large M = b_tile*C*H; f32 accumulation.
    y = jnp.dot(x_ref[...], pw_ref[...], preferred_element_type=jnp.float32)  # (b*C*H, Wp)
    if h != hp * s:  # AvgPool2d floors: drop trailing rows (static branch).
        y = y.reshape(b_tile * c, h, wp)[:, : hp * s, :]
    # H pooling: sum groups of s consecutive rows (cheap VPU/XLU adds, no matmul).
    y = y.reshape(b_tile * c * hp, s, wp).sum(axis=1) * inv_area
    y = y.astype(o_ref.dtype).reshape(b_tile, c * hp, wp)  # lane dim unchanged
    o_ref[:, : c * hp, :] = y
    if n_out > c:
        o_ref[:, c * hp:, :] = jnp.zeros((b_tile, (n_out - c) * hp, wp), o_ref.dtype)


def downsample_b(x, stride, n_out, *, b_tile=None, pooling="auto", fused_hw_limit=1024):
    """Pallas equivalent of DownsampleB(nIn, nOut, stride).forward(x)."""
    n, c, h, w = x.shape
    s = int(stride)
    assert s >= 1
    # torch.cat([x] + [x*0]*(nOut//nIn - 1)) -> (nOut//nIn)*nIn channels (>= nIn).
    n_out_eff = max(n_out // c, 1) * c
    hp, wp = h // s, w // s  # AvgPool2d(stride) floors non-divisible dims
    assert hp >= 1 and wp >= 1, "spatial dims smaller than stride"
    hw, hpwp = h * w, hp * wp
    inv_area = 1.0 / float(s * s)
    itemsize = jnp.dtype(x.dtype).itemsize

    if pooling == "auto":
        pooling = "fused" if hw <= fused_hw_limit else "separable"
    assert pooling in ("fused", "separable")

    # Pooling matrices as exact 0/1 masks in the input dtype (MXU-native inputs);
    # the 1/stride^2 scale is applied once to the f32 accumulator in-kernel.
    pw01 = (jnp.arange(w)[:, None] // s == jnp.arange(wp)[None, :]).astype(x.dtype)
    if pooling == "fused":
        ph01 = (jnp.arange(h)[:, None] // s == jnp.arange(hp)[None, :]).astype(x.dtype)
        pool_mat = jnp.kron(ph01, pw01)  # (H*W, Hp*Wp), still small (fused only if H*W <= ~1K)
    else:
        pool_mat = pw01                  # (W, Wp): a few KB, scales to any spatial size

    # Per-generation VMEM budget (v7x has only 64 MiB physical VMEM; v5e/v6e 128 MiB).
    try:
        vmem_cap = int(pltpu.get_tpu_info().vmem_capacity_bytes)
    except Exception:
        vmem_cap = 64 * 1024 * 1024  # conservative fallback (v7x physical)
    vmem_limit = int(min(max(int(vmem_cap * 0.70), 32 * 1024 * 1024), 100 * 1024 * 1024))
    block_budget = int(vmem_limit * 0.55)

    def block_bytes(bt):
        if pooling == "fused":
            in_b = _tile_bytes((bt * c, hw), itemsize)
            out_b = _tile_bytes((bt, n_out_eff * hpwp), itemsize)
            tmp_b = 2 * _tile_bytes((bt * c, hpwp), 4)      # f32 accumulator + cast copy
            p_b = _tile_bytes((hw, hpwp), itemsize)
        else:
            in_b = _tile_bytes((bt * c * h, w), itemsize)
            out_b = _tile_bytes((bt, n_out_eff * hp, wp), itemsize)
            tmp_b = 2 * _tile_bytes((bt * c * h, wp), 4)
            p_b = _tile_bytes((w, wp), itemsize)
        return 2 * (in_b + out_b) + 2 * p_b + tmp_b          # double-buffered blocks + temps

    def aligned(bt):
        # Keep each block's second-to-last dim 8-aligned or full-extent (the (8,128)
        # BlockSpec rule); the lane dims are always full-extent here.
        if pooling == "fused":
            return bt == n or bt % 8 == 0
        return bt == n or (bt * c * h) % 8 == 0

    if b_tile is None:
        divisors = [d for d in range(1, n + 1) if n % d == 0]
        cands = [d for d in divisors if aligned(d) and block_bytes(d) <= block_budget]
        multi = [d for d in cands if n // d >= 2]  # >=2 grid steps -> both v7x TCs get work
        if multi:
            b_tile = max(multi)        # largest fitting tile also maximizes MXU M = b_tile*C
        elif cands:
            b_tile = max(cands)
        else:
            al = [d for d in divisors if aligned(d)]
            b_tile = min(al) if al else n
    assert n % b_tile == 0, "b_tile must divide the batch size"

    if pooling == "fused":
        x_in = x.reshape(n * c, hw)                                 # free, row-major
        in_spec = pl.BlockSpec((b_tile * c, hw), lambda i: (i, 0))  # matmul-ready, no relayout
        out_shape = jax.ShapeDtypeStruct((n, n_out_eff * hpwp), x.dtype)   # lane-dense
        out_spec = pl.BlockSpec((b_tile, n_out_eff * hpwp), lambda i: (i, 0))
        kernel = functools.partial(_fused_kernel, c=c, n_out=n_out_eff,
                                   hpwp=hpwp, inv_area=inv_area)
    else:
        x_in = x.reshape(n * c * h, w)                              # free, row-major
        in_spec = pl.BlockSpec((b_tile * c * h, w), lambda i: (i, 0))
        out_shape = jax.ShapeDtypeStruct((n, n_out_eff * hp, wp), x.dtype)
        out_spec = pl.BlockSpec((b_tile, n_out_eff * hp, wp), lambda i: (i, 0, 0))
        kernel = functools.partial(_separable_kernel, c=c, n_out=n_out_eff,
                                   h=h, hp=hp, s=s, wp=wp, inv_area=inv_area)

    out = pl.pallas_call(
        kernel,
        out_shape=out_shape,
        grid_spec=pltpu.PrefetchScalarGridSpec(
            num_scalar_prefetch=0,
            grid=(n // b_tile,),
            in_specs=[
                in_spec,
                pl.BlockSpec(pool_mat.shape, lambda i: (0, 0)),  # resident pooling weights
            ],
            out_specs=out_spec,
        ),
        compiler_params=pltpu.CompilerParams(
            dimension_semantics=("parallel",),
            vmem_limit_bytes=vmem_limit,
        ),
    )(x_in, pool_mat)

    return out.reshape(n, n_out_eff, hp, wp)


def _reference(x, stride, n_out):
    """Pure-JAX reference: AvgPool2d(stride) (floor) then zero-channel expansion."""
    n, c, h, w = x.shape
    s = stride
    hp, wp = h // s, w // s
    pooled = x[:, :, : hp * s, : wp * s].reshape(n, c, hp, s, wp, s).mean(axis=(3, 5))
    expand = max(n_out // c, 1)
    if expand > 1:
        pooled = jnp.concatenate(
            [pooled, jnp.zeros((n, (expand - 1) * c, hp, wp), x.dtype)], axis=1)
    return pooled


if __name__ == "__main__":
    # Module config consistent with DownsampleB(nIn=4, nOut=8, stride=2).
    n_in, n_out, stride = 4, 8, 2
    batch, spatial = 2, 16

    key = jax.random.PRNGKey(0)
    x = jax.random.normal(key, (batch, n_in, spatial, spatial), dtype=jnp.float32)

    # 1) fused-Kronecker path (the "auto" choice at this spatial size).
    out_fused = jax.block_until_ready(downsample_b(x, stride, n_out))
    ref = _reference(x, stride, n_out)
    assert out_fused.shape == ref.shape, out_fused.shape
    assert jnp.allclose(out_fused, ref, atol=1e-5, rtol=1e-5), "fused path mismatch"

    # 2) separable path (the auto default for large H*W), forced here for coverage.
    out_sep = jax.block_until_ready(downsample_b(x, stride, n_out, pooling="separable"))
    assert jnp.allclose(out_sep, ref, atol=1e-5, rtol=1e-5), "separable path mismatch"

    # 3) non-divisible spatial dims: matches nn.AvgPool2d floor semantics (stride 3).
    out_s3 = jax.block_until_ready(downsample_b(x, 3, n_out))
    ref_s3 = _reference(x, 3, n_out)
    assert out_s3.shape == ref_s3.shape, out_s3.shape
    assert jnp.allclose(out_s3, ref_s3, atol=1e-5, rtol=1e-5), "stride-3 (floor) mismatch"

    print("KERNEL_OK")
</pallas_src>

<mosaic_0001>
module attributes {stable_mosaic.version = 11 : i64} {
  func.func @_fused_kernel(%arg0: i32, %arg1: memref<8x256xf32, #tpu.memory_space<vmem>>, %arg2: memref<256x64xf32, #tpu.memory_space<vmem>>, %arg3: memref<2x512xf32, #tpu.memory_space<vmem>>) attributes {dimension_semantics = [#tpu.dimension_semantics<parallel>], iteration_bounds = array<i64: 1>, scalar_prefetch = 0 : i64, scratch_operands = 0 : i64, tpu.core_type = #tpu.core_type<tc>, window_params = [{transform_indices = @transform_0, window_bounds = array<i64: 8, 256>}, {pipeline_mode = #tpu.pipeline_mode<synchronous>, transform_indices = @transform_1, window_bounds = array<i64: 256, 64>}, {transform_indices = @transform_2, window_bounds = array<i64: 2, 512>}]} {
    %c0 = arith.constant 0 : index
    %c0_0 = arith.constant 0 : index
    %0 = vector.load %arg1[%c0, %c0_0] : memref<8x256xf32, #tpu.memory_space<vmem>>, vector<8x256xf32>
    %c0_1 = arith.constant 0 : index
    %c0_2 = arith.constant 0 : index
    %1 = vector.load %arg2[%c0_1, %c0_2] : memref<256x64xf32, #tpu.memory_space<vmem>>, vector<256x64xf32>
    %cst = arith.constant dense<0.000000e+00> : vector<8x64xf32>
    %2 = tpu.matmul %0, %1, %cst {dimension_numbers = #tpu.dot_dimension_numbers<[1], [0], [0], [1], [0, 0, 1, 1], [], []>} : vector<8x256xf32>, vector<256x64xf32>, vector<8x64xf32> -> vector<8x64xf32>
    %cst_3 = arith.constant 2.500000e-01 : f32
    %3 = vector.broadcast %cst_3 : f32 to vector<8x64xf32>
    %4 = arith.mulf %2, %3 : vector<8x64xf32>
    %5 = vector.shape_cast %4 : vector<8x64xf32> to vector<2x4x64xf32>
    %6 = vector.extract_strided_slice %5 {offsets = [0, 0, 0], sizes = [2, 1, 64], strides = [1, 1, 1]} : vector<2x4x64xf32> to vector<2x1x64xf32>
    %7 = vector.shape_cast %6 : vector<2x1x64xf32> to vector<2x64xf32>
    %c0_4 = arith.constant 0 : index
    %c0_5 = arith.constant 0 : index
    %8 = vector.load %arg3[%c0_4, %c0_5] : memref<2x512xf32, #tpu.memory_space<vmem>>, vector<2x64xf32>
    tpu.vector_store %arg3[%c0_4, %c0_5], %7 {strides = array<i32>} : memref<2x512xf32, #tpu.memory_space<vmem>>, vector<2x64xf32>,
    %9 = vector.extract_strided_slice %5 {offsets = [0, 1, 0], sizes = [2, 1, 64], strides = [1, 1, 1]} : vector<2x4x64xf32> to vector<2x1x64xf32>
    %10 = vector.shape_cast %9 : vector<2x1x64xf32> to vector<2x64xf32>
    %c0_6 = arith.constant 0 : index
    %c64 = arith.constant 64 : index
    %11 = vector.load %arg3[%c0_6, %c64] : memref<2x512xf32, #tpu.memory_space<vmem>>, vector<2x64xf32>
    tpu.vector_store %arg3[%c0_6, %c64], %10 {strides = array<i32>} : memref<2x512xf32, #tpu.memory_space<vmem>>, vector<2x64xf32>,
    %12 = vector.extract_strided_slice %5 {offsets = [0, 2, 0], sizes = [2, 1, 64], strides = [1, 1, 1]} : vector<2x4x64xf32> to vector<2x1x64xf32>
    %13 = vector.shape_cast %12 : vector<2x1x64xf32> to vector<2x64xf32>
    %c0_7 = arith.constant 0 : index
    %c128 = arith.constant 128 : index
    %14 = vector.load %arg3[%c0_7, %c128] : memref<2x512xf32, #tpu.memory_space<vmem>>, vector<2x64xf32>
    tpu.vector_store %arg3[%c0_7, %c128], %13 {strides = array<i32>} : memref<2x512xf32, #tpu.memory_space<vmem>>, vector<2x64xf32>,
    %15 = vector.extract_strided_slice %5 {offsets = [0, 3, 0], sizes = [2, 1, 64], strides = [1, 1, 1]} : vector<2x4x64xf32> to vector<2x1x64xf32>
    %16 = vector.shape_cast %15 : vector<2x1x64xf32> to vector<2x64xf32>
    %c0_8 = arith.constant 0 : index
    %c192 = arith.constant 192 : index
    %17 = vector.load %arg3[%c0_8, %c192] : memref<2x512xf32, #tpu.memory_space<vmem>>, vector<2x64xf32>
    tpu.vector_store %arg3[%c0_8, %c192], %16 {strides = array<i32>} : memref<2x512xf32, #tpu.memory_space<vmem>>, vector<2x64xf32>,
    %cst_9 = arith.constant 0.000000e+00 : f32
    %18 = vector.broadcast %cst_9 : f32 to vector<2x256xf32>
    %c0_10 = arith.constant 0 : index
    %c256 = arith.constant 256 : index
    %19 = vector.load %arg3[%c0_10, %c256] : memref<2x512xf32, #tpu.memory_space<vmem>>, vector<2x256xf32>
    tpu.vector_store %arg3[%c0_10, %c256], %18 {strides = array<i32>} : memref<2x512xf32, #tpu.memory_space<vmem>>, vector<2x256xf32>,
    return
  }
  func.func @transform_0(%arg0: i32) -> (i32, i32) {
    %c0_i32 = arith.constant 0 : i32
    %c0_i32_0 = arith.constant 0 : i32
    return %arg0, %c0_i32 : i32, i32
  }
  func.func @transform_1(%arg0: i32) -> (i32, i32) {
    %c0_i32 = arith.constant 0 : i32
    %c0_i32_0 = arith.constant 0 : i32
    %c0_i32_1 = arith.constant 0 : i32
    return %c0_i32, %c0_i32_0 : i32, i32
  }
  func.func @transform_2(%arg0: i32) -> (i32, i32) {
    %c0_i32 = arith.constant 0 : i32
    %c0_i32_0 = arith.constant 0 : i32
    return %arg0, %c0_i32 : i32, i32
  }
}

</mosaic_0001>

<llo_original>
// kernel: tpu_custom_call.1
$region0: #{tpu_custom_call.1}
  #allocation0 [shape = 'u32[]', space=smem, size = 0x4, offset = 0x4, fixed_abs, tag = 'smem constant byte address 0x4 - core index']
  #allocation1 [shape = 'u32[144,128]{1,0:T(1,128)}', space=vmem, size = 0x12000, scoped, tag = 'internal scratch']
  %s0 = inlined_call_operand.vmem [shape: f32[8,256], index: 0, kind: input, shape index: {}]
  %s1 = inlined_call_operand.vmem [shape: f32[256,64], index: 1, kind: input, shape index: {}]
  %s2 = inlined_call_operand.hbm [shape: f32[2,512], index: 2, kind: output, shape index: {}]
  %s3 = sld [smem:[#allocation0]]
  $region18: #{tpu_custom_call.1} parent=0
    _
  %s5 = ssub.s32 1, %s3
  %s6 = scalar_select 0, %s5, %s3
  $region1: #{tpu_custom_call.1} parent=0
    #allocation2 [shape = 'u8[4096]{0}', space=vmem, size = 0x1000, scoped, tag = 'output window, operand 0, single buffered']
    #allocation3 [shape = 's32[1]{0}', space=sflag, size = 0x4, scoped, tag = 'scoped memory for tpu_custom_call.1']
    %7 = vsyncpa [#allocation3], 0
    // Predicated region
    $region2: #{tpu_custom_call.1} parent=1 // pred_check
      _
    $region3: #{tpu_custom_call.1} parent=1 // pred_check_branch
      %9 = sbr.rel (0) target = $region5
    $region4: #{tpu_custom_call.1} parent=1 // pred_region
      _
    $region5: #{tpu_custom_call.1} parent=1 // pred_fallthru
      _
    // Predicated region
    $region6: #{tpu_custom_call.1} parent=1 // pred_check
      _
    $region7: #{tpu_custom_call.1} parent=1 // pred_check_branch
      %11 = sbr.rel (0) target = $region9
    $region8: #{tpu_custom_call.1} parent=1 // pred_region
      _
    $region9: #{tpu_custom_call.1} parent=1 // pred_fallthru
      _
    %v12 = vld [vmem:[%s0] sm:$0xff]
    %v13 = vld [vmem:[%s0 + $0x8] sm:$0xff]
    %v14 = vld [vmem:[%s1] sm:$0xff]
    %v15 = vld [vmem:[%s1 + $0x8] sm:$0xff]
    %v16 = vld [vmem:[%s1 + $0x10] sm:$0xff]
    %v17 = vld [vmem:[%s1 + $0x18] sm:$0xff]
    %v18 = vld [vmem:[%s1 + $0x20] sm:$0xff]
    %v19 = vld [vmem:[%s1 + $0x28] sm:$0xff]
    %v20 = vld [vmem:[%s1 + $0x30] sm:$0xff]
    %v21 = vld [vmem:[%s1 + $0x38] sm:$0xff]
    %v22 = vld [vmem:[%s1 + $0x40] sm:$0xff]
    %v23 = vld [vmem:[%s1 + $0x48] sm:$0xff]
    %v24 = vld [vmem:[%s1 + $0x50] sm:$0xff]
    %v25 = vld [vmem:[%s1 + $0x58] sm:$0xff]
    %v26 = vld [vmem:[%s1 + $0x60] sm:$0xff]
    %v27 = vld [vmem:[%s1 + $0x68] sm:$0xff]
    %v28 = vld [vmem:[%s1 + $0x70] sm:$0xff]
    %v29 = vld [vmem:[%s1 + $0x78] sm:$0xff]
    %v30 = vld [vmem:[%s1 + $0x80] sm:$0xff]
    %v31 = vld [vmem:[%s1 + $0x88] sm:$0xff]
    %v32 = vld [vmem:[%s1 + $0x90] sm:$0xff]
    %v33 = vld [vmem:[%s1 + $0x98] sm:$0xff]
    %v34 = vld [vmem:[%s1 + $0xa0] sm:$0xff]
    %v35 = vld [vmem:[%s1 + $0xa8] sm:$0xff]
    %v36 = vld [vmem:[%s1 + $0xb0] sm:$0xff]
    %v37 = vld [vmem:[%s1 + $0xb8] sm:$0xff]
    %v38 = vld [vmem:[%s1 + $0xc0] sm:$0xff]
    %v39 = vld [vmem:[%s1 + $0xc8] sm:$0xff]
    %v40 = vld [vmem:[%s1 + $0xd0] sm:$0xff]
    %v41 = vld [vmem:[%s1 + $0xd8] sm:$0xff]
    %v42 = vld [vmem:[%s1 + $0xe0] sm:$0xff]
    %v43 = vld [vmem:[%s1 + $0xe8] sm:$0xff]
    %v44 = vld [vmem:[%s1 + $0xf0] sm:$0xff]
    %v45 = vld [vmem:[%s1 + $0xf8] sm:$0xff]
    %46 = vmatprep.subr.mxu0 0.0
    %47 = vmatpush1.msra.mxu0 %v29
    %48 = vmatprep.subr.mxu0 0.0
    %49 = vmatpush1.msra.mxu0 %v28
    %50 = vmatprep.subr.mxu0 0.0
    %51 = vmatpush1.msra.mxu0 %v27
    %52 = vmatprep.subr.mxu0 0.0
    %53 = vmatpush1.msra.mxu0 %v26
    %54 = vmatprep.subr.mxu0 0.0
    %55 = vmatpush1.msra.mxu0 %v25
    %56 = vmatprep.subr.mxu0 0.0
    %57 = vmatpush1.msra.mxu0 %v24
    %58 = vmatprep.subr.mxu0 0.0
    %59 = vmatpush1.msra.mxu0 %v23
    %60 = vmatprep.subr.mxu0 0.0
    %61 = vmatpush1.msra.mxu0 %v22
    %62 = vmatprep.subr.mxu0 0.0
    %63 = vmatpush1.msra.mxu0 %v21
    %64 = vmatprep.subr.mxu0 0.0
    %65 = vmatpush1.msra.mxu0 %v20
    %66 = vmatprep.subr.mxu0 0.0
    %67 = vmatpush1.msra.mxu0 %v19
    %68 = vmatprep.subr.mxu0 0.0
    %69 = vmatpush1.msra.mxu0 %v18
    %70 = vmatprep.subr.mxu0 0.0
    %71 = vmatpush1.msra.mxu0 %v17
    %72 = vmatprep.subr.mxu0 0.0
    %73 = vmatpush1.msra.mxu0 %v16
    %74 = vmatprep.subr.mxu0 0.0
    %75 = vmatpush1.msra.mxu0 %v15
    %76 = vmatprep.subr.mxu0 0.0
    %77 = vmatpush1.msra.mxu0 %v14
    %78 = vmatprep.subr.mxu0 0.0
    %79 = vmatpush2.msra.mxu0 %v45
    %80 = vmatprep.subr.mxu0 0.0
    %81 = vmatpush2.msra.mxu0 %v44
    %82 = vmatprep.subr.mxu0 0.0
    %83 = vmatpush2.msra.mxu0 %v43
    %84 = vmatprep.subr.mxu0 0.0
    %85 = vmatpush2.msra.mxu0 %v42
    %86 = vmatprep.subr.mxu0 0.0
    %87 = vmatpush2.msra.mxu0 %v41
    %88 = vmatprep.subr.mxu0 0.0
    %89 = vmatpush2.msra.mxu0 %v40
    %90 = vmatprep.subr.mxu0 0.0
    %91 = vmatpush2.msra.mxu0 %v39
    %92 = vmatprep.subr.mxu0 0.0
    %93 = vmatpush2.msra.mxu0 %v38
    %94 = vmatprep.subr.mxu0 0.0
    %95 = vmatpush2.msra.mxu0 %v37
    %96 = vmatprep.subr.mxu0 0.0
    %97 = vmatpush2.msra.mxu0 %v36
    %98 = vmatprep.subr.mxu0 0.0
    %99 = vmatpush2.msra.mxu0 %v35
    %100 = vmatprep.subr.mxu0 0.0
    %101 = vmatpush2.msra.mxu0 %v34
    %102 = vmatprep.subr.mxu0 0.0
    %103 = vmatpush2.msra.mxu0 %v33
    %104 = vmatprep.subr.mxu0 0.0
    %105 = vmatpush2.msra.mxu0 %v32
    %106 = vmatprep.subr.mxu0 0.0
    %107 = vmatpush2.msra.mxu0 %v31
    %108 = vmatprep.subr.mxu0 0.0
    %109 = vmatpush2.msra.mxu0 %v30
    %110 = vmatprep.mubr.f32.mxu0 %v13
    %111 = vmatmul.mubr.f32.gmra.mxu0 %v12
    %v112 = vpop.f32.mrf.mxu0
    %v113 = vadd.f32 0.0, %v112
    %v114 = vpop.f32.mrf.mxu0
    %115 = vdwg.mxu0
    %v116 = vmul.f32 %v113, 0.25
    %v118 = vcombine.high %v116, %v116
    %v120 = vunpack.c.l.s4 1983009808
    %v121 = vunpack.c.0.s8 %v120
    %v122 = vlaneseq
    %v123 = vshrl.u32 %v122, 7
    %v124 = vsub.s32 %v121, %v123
    %v125 = vrot.slane %v116, %v124
    %v127 = vunpack.c.l.s4 1983009808
    %v128 = vunpack.c.0.s8 %v127
    %v129 = vlaneseq
    %v130 = vshrl.u32 %v129, 7
    %v131 = vsub.s32 %v128, %v130
    %v132 = vrot.slane %v118, %v131
    %vm133 = vcmask 1044484
    %v134 = vsel %vm133, %v125, %v125
    %vm135 = vcmask 1046534
    %v136 = vsel %vm135, %v125, %v134
    %v137 = vrot.slane %v132, 7
    %vm138 = vcmask 1041409
    %v139 = vsel %vm138, %v137, %v136
    %vm140 = vcmask 1043459
    %v141 = vsel %vm140, %v137, %v139
    %vm142 = vcmask 1045509
    %v143 = vsel %vm142, %v137, %v141
    %vm144 = vcmask 1047559
    %v145 = vsel %vm144, %v137, %v143
    %vm147 = vcmask 517120
    %148 = vst.msk [vmem:[#allocation2] sm:$0x3] %vm147, %v145
    %v149 = vrot.slane %v125, 1
    %v150 = vsel %vm133, %v149, %v149
    %v151 = vsel %vm135, %v149, %v150
    %v152 = vsel %vm138, %v132, %v151
    %v153 = vsel %vm140, %v132, %v152
    %v154 = vsel %vm142, %v132, %v153
    %v155 = vsel %vm144, %v132, %v154
    %156 = vrot.lane.b32.xlu0 %v155, 64
    %v157 = vpop.permute.xlu0 %156
    %vm159 = vcmask 1041920
    %160 = vst.msk [vmem:[#allocation2] sm:$0x3] %vm159, %v157
    %v161 = vcombine.high %v125, %v125
    %v162 = vcombine.high %v132, %v132
    %v163 = vsel %vm133, %v161, %v161
    %v164 = vsel %vm135, %v161, %v163
    %v165 = vrot.slane %v162, 7
    %v166 = vsel %vm138, %v165, %v164
    %v167 = vsel %vm140, %v165, %v166
    %v168 = vsel %vm142, %v165, %v167
    %v169 = vsel %vm144, %v165, %v168
    %171 = vst.msk [vmem:[#allocation2 + $0x2] sm:$0x3] %vm147, %v169
    %v172 = vrot.slane %v161, 1
    %v173 = vsel %vm133, %v172, %v172
    %v174 = vsel %vm135, %v172, %v173
    %v175 = vsel %vm138, %v162, %v174
    %v176 = vsel %vm140, %v162, %v175
    %v177 = vsel %vm142, %v162, %v176
    %v178 = vsel %vm144, %v162, %v177
    %179 = vrot.lane.b32.xlu0 %v178, 64
    %v180 = vpop.permute.xlu0 %179
    %182 = vst.msk [vmem:[#allocation2 + $0x2] sm:$0x3] %vm159, %v180
    %183 = vst [vmem:[#allocation2 + $0x4] sm:$0xf] 0.0
    // Predicated region
    $region10: #{tpu_custom_call.1} parent=1 // pred_check
      _
    $region11: #{tpu_custom_call.1} parent=1 // pred_check_branch
      %185 = sbr.rel (0) target = $region13
    $region12: #{tpu_custom_call.1} parent=1 // pred_region
      %s187 = ssub.s32 128, 128
      %188 = vsyncadd [#allocation3], %s187
      %s190 = sshll.u32 [#allocation2], 4
      %s191 = int_to_ptr.vmem [resolvable:$true] %s190
      %193 = dma.vmem_to_hbm [thread:$0]  %s191, 128, %s2, [#allocation3]
    $region13: #{tpu_custom_call.1} parent=1 // pred_fallthru
      _
    // Predicated region
    $region14: #{tpu_custom_call.1} parent=1 // pred_check
      _
    $region15: #{tpu_custom_call.1} parent=1 // pred_check_branch
      %195 = sbr.rel (0) target = $region17
    $region16: #{tpu_custom_call.1} parent=1 // pred_region
      %196 = dma.done [#allocation3], 128
    $region17: #{tpu_custom_call.1} parent=1 // pred_fallthru
      _
    %197 = vsyncpa [#allocation3], 1

</llo_original>
